<compile_context>
chip_gen: v7x
topology: tpu7x:2x2x1
jax: 0.10.0
libtpu: 0.0.40
codegen_flags: <defaults>
</compile_context>

<pallas_src>
import jax
import jax.numpy as jnp
from jax.experimental import pallas as pl
from jax.experimental.pallas import tpu as pltpu

OUT_LANES = 128  # lane-dense output width (one full vreg lane dimension)


def decoder_kernel(enc_ref, hid_ref, whc_ref, small_ref, out_ref):
    enc = enc_ref[...]                                  # (B, T, H)
    hid = hid_ref[...]                                  # (B, H)

    # softmax over the size-1 dim == 1.0  ->  unweighted sum over T.
    context = jnp.sum(enc, axis=1)                      # (B, H)

    w1 = whc_ref[0]                                     # (H, H) hidden-half, (in, out)
    w2 = whc_ref[1]                                     # (H, H) context-half, (in, out)
    whc_b = small_ref[0:1, :]                           # (1, H)
    ws_w = small_ref[1:2, :]                            # (1, H)
    ws_b = small_ref[2:3, 0:1]                          # (1, 1)

    # h1 = relu([hid | context] @ Whc.T + b) as two accumulating MXU dots
    # (no lane-axis concatenate needed).
    h1 = (jnp.dot(hid, w1, preferred_element_type=jnp.float32)
          + jnp.dot(context, w2, preferred_element_type=jnp.float32)
          + whc_b)
    h1 = jnp.maximum(h1, 0.0)                           # (B, H)

    # Ws projection (out_features = 1): VPU multiply + lane reduction.
    out = jnp.sum(h1 * ws_w, axis=-1, keepdims=True) + ws_b      # (B, 1)

    # Lane-dense store: broadcast the scalar across all 128 lanes.
    out_ref[...] = jnp.broadcast_to(out, out_ref.shape)


def pack_decoder_params(params):
    """One-time wrapper-side repacking into MXU/DMA-friendly layouts."""
    attn_w, attn_b, whc_w, whc_b, ws_w, ws_b = params
    del attn_w, attn_b  # dead: softmax over the size-1 dim makes the attn path unobservable
    H = whc_w.shape[0]

    whc_wT = whc_w.T.astype(jnp.float32)                # (2H, H), (in, out) layout
    whc_packed = jnp.stack([whc_wT[:H], whc_wT[H:]], axis=0)     # (2, H, H)

    small = jnp.zeros((3, H), jnp.float32)
    small = small.at[0].set(whc_b.astype(jnp.float32))
    small = small.at[1].set(ws_w.reshape(-1).astype(jnp.float32))
    small = small.at[2, 0].set(ws_b.reshape(-1)[0].astype(jnp.float32))
    return whc_packed, small


def decoder_forward(encoder_outputs, hidden, packed_params):
    """Runs the Decoder forward pass via one pallas_call.

    Returns (output (B,1), hidden (B,H), attn_weights (B,1,T)) — same as PyTorch.
    """
    B, T, _H = encoder_outputs.shape
    whc_packed, small = packed_params

    vmem = pl.BlockSpec(memory_space=pltpu.MemorySpace.VMEM)
    out_padded = pl.pallas_call(
        decoder_kernel,
        out_shape=jax.ShapeDtypeStruct((B, OUT_LANES), jnp.float32),
        in_specs=[vmem, vmem, vmem, vmem],
        out_specs=vmem,
    )(encoder_outputs, hidden, whc_packed, small)

    output = out_padded[:, :1]                           # (B, 1)
    # softmax over the size-1 dim is identically 1 -> no kernel output needed.
    attn_weights = jnp.ones((B, 1, T), jnp.float32)
    return output, hidden, attn_weights


decoder_forward = jax.jit(decoder_forward)


def init_params(key, hidden_size):
    """Deterministic init matching PyTorch nn.Linear shapes (W: (out, in))."""
    H = hidden_size
    ks = jax.random.split(key, 6)

    def uinit(k, shape, fan_in):
        bound = 1.0 / jnp.sqrt(float(fan_in))
        return jax.random.uniform(k, shape, jnp.float32, -bound, bound)

    attn_w = uinit(ks[0], (H, H), H)            # attn: Linear(H, H)
    attn_b = uinit(ks[1], (H,), H)
    whc_w = uinit(ks[2], (H, 2 * H), 2 * H)     # Whc: Linear(2H, H)
    whc_b = uinit(ks[3], (H,), 2 * H)
    ws_w = uinit(ks[4], (1, H), H)              # Ws: Linear(H, 1)
    ws_b = uinit(ks[5], (1,), H)
    return attn_w, attn_b, whc_w, whc_b, ws_w, ws_b


def decoder_reference(encoder_outputs, hidden, params):
    """Pure-JAX mirror of the PyTorch forward (correctness oracle)."""
    attn_w, attn_b, whc_w, whc_b, ws_w, ws_b = params
    a = hidden @ attn_w.T + attn_b                                   # (B, H)
    attn_prod = jnp.einsum("bh,bth->bt", a, encoder_outputs)[:, None, :]  # (B,1,T)
    attn_weights = jax.nn.softmax(attn_prod, axis=1)                 # size-1 axis
    context = jnp.einsum("bkt,bth->bkh", attn_weights, encoder_outputs)[:, 0, :]
    hc = jnp.concatenate([hidden, context], axis=1)
    h1 = jnp.maximum(hc @ whc_w.T + whc_b, 0.0)
    out = h1 @ ws_w.T + ws_b
    return out, hidden, attn_weights


if __name__ == "__main__":
    B, T, H = 2, 8, 32  # batch, encoder seq length, hidden_size

    key = jax.random.PRNGKey(0)
    k_enc, k_hid, k_par = jax.random.split(key, 3)

    encoder_outputs = jax.random.normal(k_enc, (B, T, H), jnp.float32)
    hidden = jax.random.normal(k_hid, (B, H), jnp.float32)
    params = init_params(k_par, H)
    packed = pack_decoder_params(params)

    output, hidden_out, attn_weights = decoder_forward(encoder_outputs, hidden, packed)
    jax.block_until_ready((output, hidden_out, attn_weights))

    assert output.shape == (B, 1)
    assert hidden_out.shape == (B, H)
    assert attn_weights.shape == (B, 1, T)

    ref_out, ref_hid, ref_attn = decoder_reference(encoder_outputs, hidden, params)
    assert bool(jnp.allclose(output, ref_out, atol=2e-2, rtol=2e-2))
    assert bool(jnp.allclose(hidden_out, ref_hid))
    assert bool(jnp.allclose(attn_weights, ref_attn, atol=1e-6))

    print("KERNEL_OK")
</pallas_src>

<mosaic_0001>
module attributes {stable_mosaic.version = 11 : i64} {
  func.func @decoder_kernel(%arg0: memref<2x8x32xf32, #tpu.memory_space<vmem>>, %arg1: memref<2x32xf32, #tpu.memory_space<vmem>>, %arg2: memref<2x32x32xf32, #tpu.memory_space<vmem>>, %arg3: memref<3x32xf32, #tpu.memory_space<vmem>>, %arg4: memref<2x128xf32, #tpu.memory_space<vmem>>) attributes {dimension_semantics = [], scalar_prefetch = 0 : i64, scratch_operands = 0 : i64, tpu.core_type = #tpu.core_type<tc>} {
    %c0 = arith.constant 0 : index
    %c0_0 = arith.constant 0 : index
    %c0_1 = arith.constant 0 : index
    %0 = vector.load %arg0[%c0, %c0_0, %c0_1] : memref<2x8x32xf32, #tpu.memory_space<vmem>>, vector<2x8x32xf32>
    %c0_2 = arith.constant 0 : index
    %c0_3 = arith.constant 0 : index
    %1 = vector.load %arg1[%c0_2, %c0_3] : memref<2x32xf32, #tpu.memory_space<vmem>>, vector<2x32xf32>
    %cst = arith.constant dense<0.000000e+00> : vector<2x32xf32>
    %2 = vector.multi_reduction <add>, %0, %cst [1] : vector<2x8x32xf32> to vector<2x32xf32>
    %c0_4 = arith.constant 0 : index
    %c0_5 = arith.constant 0 : index
    %c0_6 = arith.constant 0 : index
    %3 = vector.load %arg2[%c0_4, %c0_5, %c0_6] : memref<2x32x32xf32, #tpu.memory_space<vmem>>, vector<1x32x32xf32>
    %4 = vector.shape_cast %3 : vector<1x32x32xf32> to vector<32x32xf32>
    %c1 = arith.constant 1 : index
    %c0_7 = arith.constant 0 : index
    %c0_8 = arith.constant 0 : index
    %5 = vector.load %arg2[%c1, %c0_7, %c0_8] : memref<2x32x32xf32, #tpu.memory_space<vmem>>, vector<1x32x32xf32>
    %6 = vector.shape_cast %5 : vector<1x32x32xf32> to vector<32x32xf32>
    %c0_9 = arith.constant 0 : index
    %c0_10 = arith.constant 0 : index
    %7 = vector.load %arg3[%c0_9, %c0_10] : memref<3x32xf32, #tpu.memory_space<vmem>>, vector<1x32xf32>
    %c1_11 = arith.constant 1 : index
    %c0_12 = arith.constant 0 : index
    %8 = vector.load %arg3[%c1_11, %c0_12] : memref<3x32xf32, #tpu.memory_space<vmem>>, vector<1x32xf32>
    %c2 = arith.constant 2 : index
    %c0_13 = arith.constant 0 : index
    %9 = vector.load %arg3[%c2, %c0_13] : memref<3x32xf32, #tpu.memory_space<vmem>>, vector<1x1xf32>
    %cst_14 = arith.constant dense<0.000000e+00> : vector<2x32xf32>
    %10 = tpu.matmul %1, %4, %cst_14 {dimension_numbers = #tpu.dot_dimension_numbers<[1], [0], [0], [1], [0, 0, 1, 1], [], []>} : vector<2x32xf32>, vector<32x32xf32>, vector<2x32xf32> -> vector<2x32xf32>
    %cst_15 = arith.constant dense<0.000000e+00> : vector<2x32xf32>
    %11 = tpu.matmul %2, %6, %cst_15 {dimension_numbers = #tpu.dot_dimension_numbers<[1], [0], [0], [1], [0, 0, 1, 1], [], []>} : vector<2x32xf32>, vector<32x32xf32>, vector<2x32xf32> -> vector<2x32xf32>
    %12 = arith.addf %10, %11 : vector<2x32xf32>
    %13 = vector.broadcast %7 : vector<1x32xf32> to vector<2x32xf32>
    %14 = arith.addf %12, %13 : vector<2x32xf32>
    %cst_16 = arith.constant 0.000000e+00 : f32
    %15 = vector.broadcast %cst_16 : f32 to vector<2x32xf32>
    %16 = arith.maximumf %14, %15 : vector<2x32xf32>
    %17 = vector.broadcast %8 : vector<1x32xf32> to vector<2x32xf32>
    %18 = arith.mulf %16, %17 : vector<2x32xf32>
    %cst_17 = arith.constant dense<0.000000e+00> : vector<2xf32>
    %19 = vector.multi_reduction <add>, %18, %cst_17 [1] : vector<2x32xf32> to vector<2xf32>
    %20 = vector.shape_cast %19 : vector<2xf32> to vector<2x1xf32>
    %21 = vector.broadcast %9 : vector<1x1xf32> to vector<2x1xf32>
    %22 = arith.addf %20, %21 : vector<2x1xf32>
    %23 = vector.shape_cast %22 : vector<2x1xf32> to vector<2x1xf32>
    %24 = vector.broadcast %23 : vector<2x1xf32> to vector<2x128xf32>
    %c0_18 = arith.constant 0 : index
    %c0_19 = arith.constant 0 : index
    %25 = vector.load %arg4[%c0_18, %c0_19] : memref<2x128xf32, #tpu.memory_space<vmem>>, vector<2x128xf32>
    tpu.vector_store %arg4[%c0_18, %c0_19], %24 {strides = array<i32>} : memref<2x128xf32, #tpu.memory_space<vmem>>, vector<2x128xf32>,
    return
  }
}

</mosaic_0001>

<llo_original>
// kernel: decoder_forward.1
$region0: #{decoder_forward.1}
  #allocation0 [shape = 'u32[]', space=smem, size = 0x4, offset = 0x4, fixed_abs, tag = 'smem constant byte address 0x4 - core index']
  #allocation1 [shape = 'u32[144,128]{1,0:T(1,128)}', space=vmem, size = 0x12000, scoped, tag = 'internal scratch']
  %s0 = inlined_call_operand.hbm [shape: f32[2,8,32], index: 0, kind: input, shape index: {}]
  %s1 = inlined_call_operand.vmem [shape: f32[2,32], index: 1, kind: input, shape index: {}]
  %s2 = inlined_call_operand.hbm [shape: f32[2,32,32], index: 2, kind: input, shape index: {}]
  %s3 = inlined_call_operand.vmem [shape: f32[3,32], index: 3, kind: input, shape index: {}]
  %s4 = inlined_call_operand.vmem [shape: f32[2,128], index: 4, kind: output, shape index: {}]
  %s5 = sld [smem:[#allocation0]]
  $region34: #{decoder_forward.1} parent=0
    _
  %s7 = ssub.s32 1, %s5
  %s8 = scalar_select 0, %s7, %s5
  $region1: #{decoder_forward.1} parent=0
    #allocation2 [shape = 'u8[8192]{0}', space=vmem, size = 0x2000, scoped, tag = 'input window, operand 0, single buffered']
    #allocation3 [shape = 's32[1]{0}', space=sflag, size = 0x4, scoped, tag = 'scoped memory for decoder_forward.1']
    #allocation4 [shape = 'u8[32768]{0}', space=vmem, size = 0x8000, scoped, tag = 'input window, operand 2, single buffered']
    #allocation5 [shape = 's32[1]{0}', space=sflag, size = 0x4, scoped, tag = 'scoped memory for decoder_forward.1']
    %9 = vsyncpa [#allocation3], 0
    %10 = vsyncpa [#allocation5], 0
    // Predicated region
    $region2: #{decoder_forward.1} parent=1 // pred_check
      _
    $region3: #{decoder_forward.1} parent=1 // pred_check_branch
      %12 = sbr.rel (0) target = $region5
    $region4: #{decoder_forward.1} parent=1 // pred_region
      %s14 = ssub.s32 256, 256
      %15 = vsyncadd [#allocation3], %s14
      %s16 = sshll.u32 [#allocation2], 4
      %s17 = int_to_ptr.vmem [resolvable:$true] %s16
      %22 = dma.hbm_to_vmem [thread:$0]  %s0, 256, %s17, [#allocation3], 128, 128, 8
    $region5: #{decoder_forward.1} parent=1 // pred_fallthru
      _
    // Predicated region
    $region6: #{decoder_forward.1} parent=1 // pred_check
      _
    $region7: #{decoder_forward.1} parent=1 // pred_check_branch
      %24 = sbr.rel (0) target = $region9
    $region8: #{decoder_forward.1} parent=1 // pred_region
      _
    $region9: #{decoder_forward.1} parent=1 // pred_fallthru
      _
    // Predicated region
    $region10: #{decoder_forward.1} parent=1 // pred_check
      _
    $region11: #{decoder_forward.1} parent=1 // pred_check_branch
      %26 = sbr.rel (0) target = $region13
    $region12: #{decoder_forward.1} parent=1 // pred_region
      %s28 = ssub.s32 1024, 1024
      %29 = vsyncadd [#allocation5], %s28
      %s30 = sshll.u32 [#allocation4], 4
      %s31 = int_to_ptr.vmem [resolvable:$true] %s30
      %36 = dma.hbm_to_vmem [thread:$0]  %s2, 1024, %s31, [#allocation5], 128, 128, 8
    $region13: #{decoder_forward.1} parent=1 // pred_fallthru
      _
    // Predicated region
    $region14: #{decoder_forward.1} parent=1 // pred_check
      _
    $region15: #{decoder_forward.1} parent=1 // pred_check_branch
      %38 = sbr.rel (0) target = $region17
    $region16: #{decoder_forward.1} parent=1 // pred_region
      _
    $region17: #{decoder_forward.1} parent=1 // pred_fallthru
      _
    // Predicated region
    $region18: #{decoder_forward.1} parent=1 // pred_check
      _
    $region19: #{decoder_forward.1} parent=1 // pred_check_branch
      %40 = sbr.rel (0) target = $region21
    $region20: #{decoder_forward.1} parent=1 // pred_region
      %41 = dma.done [#allocation3], 256
    $region21: #{decoder_forward.1} parent=1 // pred_fallthru
      _
    // Predicated region
    $region22: #{decoder_forward.1} parent=1 // pred_check
      _
    $region23: #{decoder_forward.1} parent=1 // pred_check_branch
      %43 = sbr.rel (0) target = $region25
    $region24: #{decoder_forward.1} parent=1 // pred_region
      %44 = dma.done [#allocation5], 1024
    $region25: #{decoder_forward.1} parent=1 // pred_fallthru
      _
    %v45 = vld [vmem:[#allocation2] sm:$0xff]
    %v46 = vld [vmem:[#allocation2 + $0x8] sm:$0xff]
    %v47 = vld [vmem:[%s1] sm:$0x3]
    %vm48 = vcmask 261120
    %v49 = vsel %vm48, %v45, 0.0
    %v50 = vrot.slane %v49, 4
    %v51 = vadd.f32 %v49, %v50
    %v52 = vrot.slane %v51, 2
    %v53 = vadd.f32 %v51, %v52
    %v54 = vrot.slane %v53, 1
    %v55 = vadd.f32 %v53, %v54
    %v56 = vsel %vm48, %v46, 0.0
    %v57 = vrot.slane %v56, 4
    %v58 = vadd.f32 %v56, %v57
    %v59 = vrot.slane %v58, 2
    %v60 = vadd.f32 %v58, %v59
    %v61 = vrot.slane %v60, 1
    %v62 = vadd.f32 %v60, %v61
    %v63 = vld [vmem:[#allocation4] sm:$0xff]
    %v64 = vld [vmem:[#allocation4 + $0x8] sm:$0xff]
    %v65 = vld [vmem:[#allocation4 + $0x10] sm:$0xff]
    %v66 = vld [vmem:[#allocation4 + $0x18] sm:$0xff]
    %s67 = scalar_lea.vmem [#allocation4], 32
    %v68 = vld [vmem:[%s67] sm:$0xff]
    %v69 = vld [vmem:[%s67 + $0x8] sm:$0xff]
    %v70 = vld [vmem:[%s67 + $0x10] sm:$0xff]
    %v71 = vld [vmem:[%s67 + $0x18] sm:$0xff]
    %v72 = vld [vmem:[%s3] sm:$0x1]
    %v73 = vld [vmem:[%s3 + $0x1] sm:$0x1]
    %v74 = vld [vmem:[%s3 + $0x2] sm:$0x1]
    %vm77 = vcmask 1041409
    %v78 = vsel %vm77, %v62, %v55
    %v79 = vsel %vm48, %v78, 0
    %81 = vmatprep.subr.mxu0 0.0
    %82 = vmatpush1.msra.mxu0 %v68
    %83 = vmatprep.subr.mxu0 0.0
    %84 = vmatpush1.msra.mxu0 %v69
    %85 = vmatprep.subr.mxu0 0.0
    %86 = vmatpush1.msra.mxu0 %v70
    %87 = vmatprep.subr.mxu0 0.0
    %88 = vmatpush1.msra.mxu0 %v71
    %89 = vmatprep.subr.mxu0 0.0
    %90 = vmatpush1.msra.mxu0 0.0
    %91 = vmatprep.subr.mxu0 0.0
    %92 = vmatpush1.msra.mxu0 0.0
    %93 = vmatprep.subr.mxu0 0.0
    %94 = vmatpush1.msra.mxu0 0.0
    %95 = vmatprep.subr.mxu0 0.0
    %96 = vmatpush1.msra.mxu0 0.0
    %97 = vmatprep.subr.mxu0 0.0
    %98 = vmatpush1.msra.mxu0 0.0
    %99 = vmatprep.subr.mxu0 0.0
    %100 = vmatpush1.msra.mxu0 0.0
    %101 = vmatprep.subr.mxu0 0.0
    %102 = vmatpush1.msra.mxu0 0.0
    %103 = vmatprep.subr.mxu0 0.0
    %104 = vmatpush1.msra.mxu0 0.0
    %105 = vmatprep.subr.mxu0 0.0
    %106 = vmatpush1.msra.mxu0 0.0
    %107 = vmatprep.subr.mxu0 0.0
    %108 = vmatpush1.msra.mxu0 0.0
    %109 = vmatprep.subr.mxu0 0.0
    %110 = vmatpush1.msra.mxu0 0.0
    %111 = vmatprep.subr.mxu0 0.0
    %112 = vmatpush1.msra.mxu0 0.0
    %113 = vmatprep.subr.mxu0 0.0
    %114 = vmatpush1.msra.mxu0 0.0
    %115 = vmatprep.subr.mxu0 0.0
    %116 = vmatpush1.msra.mxu0 0.0
    %117 = vmatprep.subr.mxu0 0.0
    %118 = vmatpush1.msra.mxu0 0.0
    %119 = vmatprep.subr.mxu0 0.0
    %120 = vmatpush1.msra.mxu0 0.0
    %121 = vmatprep.subr.mxu0 0.0
    %122 = vmatpush1.msra.mxu0 0.0
    %123 = vmatprep.subr.mxu0 0.0
    %124 = vmatpush1.msra.mxu0 0.0
    %125 = vmatprep.subr.mxu0 0.0
    %126 = vmatpush1.msra.mxu0 0.0
    %127 = vmatprep.subr.mxu0 0.0
    %128 = vmatpush1.msra.mxu0 0.0
    %129 = vmatprep.subr.mxu0 0.0
    %130 = vmatpush1.msra.mxu0 0.0
    %131 = vmatprep.subr.mxu0 0.0
    %132 = vmatpush1.msra.mxu0 0.0
    %133 = vmatprep.subr.mxu0 0.0
    %134 = vmatpush1.msra.mxu0 0.0
    %135 = vmatprep.subr.mxu0 0.0
    %136 = vmatpush1.msra.mxu0 0.0
    %137 = vmatprep.subr.mxu0 0.0
    %138 = vmatpush1.msra.mxu0 0.0
    %139 = vmatprep.subr.mxu0 0.0
    %140 = vmatpush1.msra.mxu0 0.0
    %141 = vmatprep.subr.mxu0 0.0
    %142 = vmatpush1.msra.mxu0 0.0
    %143 = vmatprep.subr.mxu0 0.0
    %144 = vmatpush1.msra.mxu0 0.0
    %145 = vmatprep.mubr.f32.mxu0 0.0
    %146 = vmatmul.mubr.f32.gmra.mrb[0].mxu0 %v79
    %v147 = vpop.f32.mrb[0].mxu0
    %v148 = vadd.f32 0.0, %v147
    %v149 = vpop.f32.mrb[0].mxu0
    %150 = vdwg.mxu0
    %v152 = vsel %vm48, %v47, 0
    %154 = vmatprep.subr.mxu0 0.0
    %155 = vmatpush1.msra.mxu0 %v63
    %156 = vmatprep.subr.mxu0 0.0
    %157 = vmatpush1.msra.mxu0 %v64
    %158 = vmatprep.subr.mxu0 0.0
    %159 = vmatpush1.msra.mxu0 %v65
    %160 = vmatprep.subr.mxu0 0.0
    %161 = vmatpush1.msra.mxu0 %v66
    %162 = vmatprep.subr.mxu0 0.0
    %163 = vmatpush1.msra.mxu0 0.0
    %164 = vmatprep.subr.mxu0 0.0
    %165 = vmatpush1.msra.mxu0 0.0
    %166 = vmatprep.subr.mxu0 0.0
    %167 = vmatpush1.msra.mxu0 0.0
    %168 = vmatprep.subr.mxu0 0.0
    %169 = vmatpush1.msra.mxu0 0.0
    %170 = vmatprep.subr.mxu0 0.0
    %171 = vmatpush1.msra.mxu0 0.0
    %172 = vmatprep.subr.mxu0 0.0
    %173 = vmatpush1.msra.mxu0 0.0
    %174 = vmatprep.subr.mxu0 0.0
    %175 = vmatpush1.msra.mxu0 0.0
    %176 = vmatprep.subr.mxu0 0.0
    %177 = vmatpush1.msra.mxu0 0.0
    %178 = vmatprep.subr.mxu0 0.0
    %179 = vmatpush1.msra.mxu0 0.0
    %180 = vmatprep.subr.mxu0 0.0
    %181 = vmatpush1.msra.mxu0 0.0
    %182 = vmatprep.subr.mxu0 0.0
    %183 = vmatpush1.msra.mxu0 0.0
    %184 = vmatprep.subr.mxu0 0.0
    %185 = vmatpush1.msra.mxu0 0.0
    %186 = vmatprep.subr.mxu0 0.0
    %187 = vmatpush1.msra.mxu0 0.0
    %188 = vmatprep.subr.mxu0 0.0
    %189 = vmatpush1.msra.mxu0 0.0
    %190 = vmatprep.subr.mxu0 0.0
    %191 = vmatpush1.msra.mxu0 0.0
    %192 = vmatprep.subr.mxu0 0.0
    %193 = vmatpush1.msra.mxu0 0.0
    %194 = vmatprep.subr.mxu0 0.0
    %195 = vmatpush1.msra.mxu0 0.0
    %196 = vmatprep.subr.mxu0 0.0
    %197 = vmatpush1.msra.mxu0 0.0
    %198 = vmatprep.subr.mxu0 0.0
    %199 = vmatpush1.msra.mxu0 0.0
    %200 = vmatprep.subr.mxu0 0.0
    %201 = vmatpush1.msra.mxu0 0.0
    %202 = vmatprep.subr.mxu0 0.0
    %203 = vmatpush1.msra.mxu0 0.0
    %204 = vmatprep.subr.mxu0 0.0
    %205 = vmatpush1.msra.mxu0 0.0
    %206 = vmatprep.subr.mxu0 0.0
    %207 = vmatpush1.msra.mxu0 0.0
    %208 = vmatprep.subr.mxu0 0.0
    %209 = vmatpush1.msra.mxu0 0.0
    %210 = vmatprep.subr.mxu0 0.0
    %211 = vmatpush1.msra.mxu0 0.0
    %212 = vmatprep.subr.mxu0 0.0
    %213 = vmatpush1.msra.mxu0 0.0
    %214 = vmatprep.subr.mxu0 0.0
    %215 = vmatpush1.msra.mxu0 0.0
    %216 = vmatprep.subr.mxu0 0.0
    %217 = vmatpush1.msra.mxu0 0.0
    %218 = vmatprep.mubr.f32.mxu0 0.0
    %219 = vmatmul.mubr.f32.gmra.mrb[0].mxu0 %v152
    %v220 = vpop.f32.mrb[0].mxu0
    %v221 = vadd.f32 %v148, %v220
    %v222 = vpop.f32.mrb[0].mxu0
    %223 = vdwg.mxu0
    %v224 = vlaneseq
    %v225 = vshrl.u32 %v224, 7
    %v226 = vsub.s32 0, %v225
    %v227 = vrot.slane %v72, %v226
    %v228 = vadd.f32 %v221, %v227
    %v229 = vmax.f32 %v228, 0.0
    %v230 = vlaneseq
    %v231 = vshrl.u32 %v230, 7
    %v232 = vsub.s32 0, %v231
    %v233 = vrot.slane %v73, %v232
    %v234 = vmul.f32 %v229, %v233
    %vm235 = vcmask 254976
    %v236 = vsel %vm235, %v234, 0.0
    %237 = vadd.xlane.f32.xlu0 %v236
    %v238 = vpop.xlane.xlu0 %237
    %v239 = vlaneseq
    %v240 = vshrl.u32 %v239, 7
    %v241 = vsub.s32 0, %v240
    %v242 = vrot.slane %v74, %v241
    %v243 = vadd.f32 %v238, %v242
    %245 = vset.pattern.permute.xlu0 0
    %246 = vperm.xlu0 %245, %v243
    %v247 = vpop.permute.xlu0 %246
    %249 = vst [vmem:[%s4] sm:$0x3] %v247
    // Predicated region
    $region26: #{decoder_forward.1} parent=1 // pred_check
      _
    $region27: #{decoder_forward.1} parent=1 // pred_check_branch
      %251 = sbr.rel (0) target = $region29
    $region28: #{decoder_forward.1} parent=1 // pred_region
      _
    $region29: #{decoder_forward.1} parent=1 // pred_fallthru
      _
    // Predicated region
    $region30: #{decoder_forward.1} parent=1 // pred_check
      _
    $region31: #{decoder_forward.1} parent=1 // pred_check_branch
      %253 = sbr.rel (0) target = $region33
    $region32: #{decoder_forward.1} parent=1 // pred_region
      _
    $region33: #{decoder_forward.1} parent=1 // pred_fallthru
      _
    %254 = vsyncpa [#allocation3], 1
    %255 = vsyncpa [#allocation5], 1

</llo_original>
